<compile_context>
chip_gen: v7x
topology: tpu7x:2x2x1
jax: 0.10.0
libtpu: 0.0.40
codegen_flags: <defaults>
</compile_context>

<pallas_src>
import functools

import jax
import jax.numpy as jnp
from jax import lax
from jax.experimental import pallas as pl
from jax.experimental.pallas import tpu as pltpu


# ----------------------------------------------------------------------------
# Pallas kernel.  Per grid step: a lane block of L = imgs_per_block * HW
# positions (whole images), channels on sublanes.
#   x1  = ReLU(1x1 conv(x) + b1)            (primary_conv, BN1 folded)
#   out = ReLU(depthwise3x3(x1) + b2)       (cheap_op BN2 + fusion_bn folded,
#                                            boundary masks folded into taps)
# ----------------------------------------------------------------------------
def _ghost_kernel(x_ref, w1_ref, b1_ref, dwp_ref, b2_ref, out_ref, *, W):
    Cin, L = x_ref.shape

    x = x_ref[...]                                   # (Cin, L), lane-dense

    # ---- primary_conv: 1x1 conv (BN folded) + ReLU as Cin broadcast FMAs.
    # w1 planes are pre-broadcast host-side -> no per-step broadcast_in_dim.
    # TODO(synk): optionally try MXU jnp.dot((Cout,Cin),(Cin,L)) and compare
    # bundle dumps (VALU is the binding slot, MXU idle).
    x1 = b1_ref[...]                                 # (Cout, L)
    for ci in range(Cin):
        x1 = x1 + w1_ref[ci] * x[ci:ci + 1, :]
    x1 = jnp.maximum(x1, 0.0)

    # ---- cheap_operation + fusion_bn: depthwise 3x3 (BNs + masks folded) + ReLU.
    # Rolls use the otherwise-idle XLU slot; wrap-around across image
    # boundaries only reaches positions whose tap weight plane is zero.
    acc = b2_ref[...]                                # (Cout, L)
    for k in range(9):
        dy, dx = k // 3, k % 3
        off = (dy - 1) * W + (dx - 1)                # flat source offset
        src = x1 if off == 0 else pltpu.roll(x1, shift=(-off) % L, axis=1)
        acc = acc + src * dwp_ref[k]                 # masked lane-dense tap
    out_ref[...] = jnp.maximum(acc, 0.0).astype(out_ref.dtype)


# ----------------------------------------------------------------------------
# Chip heuristic: v7x has 2 TensorCores per chip, v5e/v6e have 1.
# ----------------------------------------------------------------------------
def _num_tensorcores():
    try:
        kind = jax.devices()[0].device_kind.lower()
        if "v7" in kind:
            return 2
    except Exception:
        pass
    return 1


# ----------------------------------------------------------------------------
# Host-side constant construction (done once): lane-dense folded params.
# ----------------------------------------------------------------------------
def _lane_dense_constants(kp, H, W, imgs_per_block):
    Cin, Cout = kp["w1"].shape
    HW = H * W
    L = imgs_per_block * HW
    f32 = jnp.float32

    w1_planes = jnp.broadcast_to(kp["w1"][:, :, None], (Cin, Cout, L)).astype(f32)
    b1_planes = jnp.broadcast_to(kp["b1"][:, None], (Cout, L)).astype(f32)
    b2_planes = jnp.broadcast_to(kp["b2"][:, None], (Cout, L)).astype(f32)

    # SAME-padding validity of each 3x3 tap, folded into the tap weights and
    # tiled per image across the lane block.
    p = jnp.arange(HW)
    h = p // W
    w = p - h * W
    masks = []
    for k in range(9):
        dy, dx = k // 3, k % 3
        ok = ((h + dy - 1 >= 0) & (h + dy - 1 <= H - 1) &
              (w + dx - 1 >= 0) & (w + dx - 1 <= W - 1))
        masks.append(ok.astype(f32))
    masks = jnp.tile(jnp.stack(masks), (1, imgs_per_block))          # (9, L)
    dw_planes = (kp["dw"][:, :, None] * masks[:, None, :]).astype(f32)  # (9,Cout,L)
    return w1_planes, b1_planes, dw_planes, b2_planes


# ----------------------------------------------------------------------------
# Wrapper: torch-layout NCHW input + folded per-channel params -> NCHW output.
# ----------------------------------------------------------------------------
def repopt_ghost_forward(x_nchw, kp, *, imgs_per_block=None):
    N, Cin, H, W = x_nchw.shape
    Cout = kp["b1"].shape[0]
    HW = H * W
    f32 = jnp.float32

    if imgs_per_block is None:
        n_tc = _num_tensorcores()
        # Single grid step on single-TC chips; >=2 "parallel" steps on v7x.
        target = N // n_tc if (n_tc > 1 and N % n_tc == 0) else N
        # Cap per-step in+out tile to a few MiB: amortizes the ~0.35us/step
        # pipeline overhead and keeps double-buffered VMEM well under v7x's
        # 64 MiB budget.
        per_img_bytes = (Cin + Cout) * HW * 4
        cap = max(1, (4 << 20) // per_img_bytes)
        limit = max(1, min(target, cap))
        imgs_per_block = max(d for d in range(1, limit + 1) if N % d == 0)
    assert N % imgs_per_block == 0, "imgs_per_block must divide N"
    L = imgs_per_block * HW
    # The roll-based depthwise is only correct if every lane block covers
    # whole images (wrap-around taps are zeroed by the masked weight planes).
    assert L % HW == 0
    grid = (N // imgs_per_block,)

    # Channels on sublanes, batch*spatial flattened on lanes.
    x_planes = x_nchw.reshape(N, Cin, HW).transpose(1, 0, 2).reshape(Cin, N * HW)
    w1_p, b1_p, dw_p, b2_p = _lane_dense_constants(kp, H, W, imgs_per_block)

    def const_spec(shape):
        nd = len(shape)
        # Constant block index -> Pallas keeps these resident (no re-DMA).
        return pl.BlockSpec(shape, lambda n, _nd=nd: (0,) * _nd)

    in_specs = [
        pl.BlockSpec((Cin, L), lambda n: (0, n)),   # input planes
        const_spec(w1_p.shape),                     # folded 1x1 weight planes
        const_spec(b1_p.shape),                     # folded bn1 bias plane
        const_spec(dw_p.shape),                     # masked depthwise tap planes
        const_spec(b2_p.shape),                     # folded bn2+fusion bias plane
    ]
    out_specs = pl.BlockSpec((Cout, L), lambda n: (0, n))

    flops = N * HW * Cout * (2 * Cin + 2 * 9 + 2)
    bytes_accessed = 4 * (x_planes.size + N * Cout * HW
                          + w1_p.size + b1_p.size + dw_p.size + b2_p.size)

    fn = pl.pallas_call(
        functools.partial(_ghost_kernel, W=W),
        out_shape=jax.ShapeDtypeStruct((Cout, N * HW), f32),
        grid_spec=pltpu.PrefetchScalarGridSpec(
            num_scalar_prefetch=0,
            grid=grid,
            in_specs=in_specs,
            out_specs=out_specs,
        ),
        compiler_params=pltpu.CompilerParams(
            dimension_semantics=("parallel",)),
        cost_estimate=pl.CostEstimate(
            flops=int(flops), transcendentals=0,
            bytes_accessed=int(bytes_accessed)),
    )
    out_planes = fn(x_planes, w1_p, b1_p, dw_p, b2_p)
    return out_planes.reshape(Cout, N, HW).transpose(1, 0, 2).reshape(N, Cout, H, W)


# ----------------------------------------------------------------------------
# Deterministic raw parameters (synthetic, no checkpoint) + host-side BN fold.
# ----------------------------------------------------------------------------
def _fold_bn(keys, c, eps=1e-5):
    gamma = 1.0 + 0.1 * jax.random.normal(keys[0], (c,), jnp.float32)
    beta = 0.1 * jax.random.normal(keys[1], (c,), jnp.float32)
    mean = 0.05 * jax.random.normal(keys[2], (c,), jnp.float32)
    var = jnp.abs(1.0 + 0.1 * jax.random.normal(keys[3], (c,), jnp.float32))
    scale = gamma / jnp.sqrt(var + eps)
    bias = beta - mean * scale
    return scale.reshape(1, 1, c), bias.reshape(1, 1, c)


def make_params(key, inp, oup):
    ks = jax.random.split(key, 14)
    # torch primary conv weight is (oup, inp, 1, 1); stored here as (inp, oup).
    w1 = 0.2 * jax.random.normal(ks[0], (inp, oup), jnp.float32)
    # torch depthwise weight is (oup, 1, 3, 3); stored here as (9, oup), k=dy*3+dx.
    dw_w = 0.2 * jax.random.normal(ks[1], (9, oup), jnp.float32)
    bn1_s, bn1_b = _fold_bn(ks[2:6], oup)
    bn2_s, bn2_b = _fold_bn(ks[6:10], oup)
    fbn_s, fbn_b = _fold_bn(ks[10:14], oup)
    return dict(w1=w1, dw_w=dw_w, bn1_s=bn1_s, bn1_b=bn1_b,
                bn2_s=bn2_s, bn2_b=bn2_b, fbn_s=fbn_s, fbn_b=fbn_b)


def fold_params(p):
    """Fold inference-mode BN affines into per-channel conv weights/biases."""
    bn1_s = p["bn1_s"].reshape(-1); bn1_b = p["bn1_b"].reshape(-1)
    bn2_s = p["bn2_s"].reshape(-1); bn2_b = p["bn2_b"].reshape(-1)
    fbn_s = p["fbn_s"].reshape(-1); fbn_b = p["fbn_b"].reshape(-1)
    w1 = p["w1"] * bn1_s[None, :]               # (Cin, Cout)
    b1 = bn1_b                                  # (Cout,)
    dw = p["dw_w"] * bn2_s[None, :]             # (9, Cout)
    dw = dw.at[4].add(fbn_s)                    # fusion_bn scale -> center tap
    b2 = bn2_b + fbn_b                          # (Cout,)
    return dict(w1=w1, b1=b1, dw=dw, b2=b2)


# ----------------------------------------------------------------------------
# Pure-JAX reference (unfolded params, NHWC) for the correctness check.
# ----------------------------------------------------------------------------
def reference(x_nhwc, p):
    dn = ('NHWC', 'HWIO', 'NHWC')
    Cout = p["w1"].shape[1]
    w1 = p["w1"][None, None]                              # (1,1,Cin,Cout)
    x1 = lax.conv_general_dilated(x_nhwc, w1, (1, 1), 'SAME',
                                  dimension_numbers=dn)
    x1 = jnp.maximum(x1 * p["bn1_s"] + p["bn1_b"], 0.0)
    dw = p["dw_w"].reshape(3, 3, Cout)[:, :, None, :]     # (3,3,1,Cout) HWIO
    x2 = lax.conv_general_dilated(x1, dw, (1, 1), 'SAME',
                                  dimension_numbers=dn,
                                  feature_group_count=Cout)
    x2 = x2 * p["bn2_s"] + p["bn2_b"]
    x2 = x2 + (x1 * p["fbn_s"] + p["fbn_b"])
    return jnp.maximum(x2, 0.0)


if __name__ == "__main__":
    key = jax.random.PRNGKey(0)
    inp, oup = 4, 8          # RepOptGhostModule(inp=4, oup=8, mode='rep')
    N, H, W = 2, 16, 16

    kx, kparam = jax.random.split(key)
    x_nchw = jax.random.normal(kx, (N, inp, H, W), jnp.float32)  # torch layout
    raw = make_params(kparam, inp, oup)
    folded = fold_params(raw)

    out_nchw = repopt_ghost_forward(x_nchw, folded)
    out_nchw = jax.block_until_ready(out_nchw)

    x_nhwc = jnp.transpose(x_nchw, (0, 2, 3, 1))
    ref_nchw = jnp.transpose(reference(x_nhwc, raw), (0, 3, 1, 2))
    err = float(jnp.max(jnp.abs(out_nchw - ref_nchw)))
    assert out_nchw.shape == (N, oup, H, W)
    assert jnp.allclose(out_nchw, ref_nchw, atol=1e-3, rtol=1e-3), \
        f"max abs err {err}"
    print("KERNEL_OK")
</pallas_src>

<mosaic_0001>
module attributes {stable_mosaic.version = 11 : i64} {
  func.func @_ghost_kernel(%arg0: i32, %arg1: memref<4x512xf32, #tpu.memory_space<vmem>>, %arg2: memref<4x8x512xf32, #tpu.memory_space<vmem>>, %arg3: memref<8x512xf32, #tpu.memory_space<vmem>>, %arg4: memref<9x8x512xf32, #tpu.memory_space<vmem>>, %arg5: memref<8x512xf32, #tpu.memory_space<vmem>>, %arg6: memref<8x512xf32, #tpu.memory_space<vmem>>) attributes {dimension_semantics = [#tpu.dimension_semantics<parallel>], iteration_bounds = array<i64: 1>, scalar_prefetch = 0 : i64, scratch_operands = 0 : i64, tpu.core_type = #tpu.core_type<tc>, window_params = [{transform_indices = @transform_0, window_bounds = array<i64: 4, 512>}, {pipeline_mode = #tpu.pipeline_mode<synchronous>, transform_indices = @transform_1, window_bounds = array<i64: 4, 8, 512>}, {pipeline_mode = #tpu.pipeline_mode<synchronous>, transform_indices = @transform_2, window_bounds = array<i64: 8, 512>}, {pipeline_mode = #tpu.pipeline_mode<synchronous>, transform_indices = @transform_3, window_bounds = array<i64: 9, 8, 512>}, {pipeline_mode = #tpu.pipeline_mode<synchronous>, transform_indices = @transform_4, window_bounds = array<i64: 8, 512>}, {transform_indices = @transform_5, window_bounds = array<i64: 8, 512>}]} {
    %c0 = arith.constant 0 : index
    %c0_0 = arith.constant 0 : index
    %0 = vector.load %arg1[%c0, %c0_0] : memref<4x512xf32, #tpu.memory_space<vmem>>, vector<4x512xf32>
    %c0_1 = arith.constant 0 : index
    %c0_2 = arith.constant 0 : index
    %1 = vector.load %arg3[%c0_1, %c0_2] : memref<8x512xf32, #tpu.memory_space<vmem>>, vector<8x512xf32>
    %c0_3 = arith.constant 0 : index
    %c0_4 = arith.constant 0 : index
    %c0_5 = arith.constant 0 : index
    %2 = vector.load %arg2[%c0_3, %c0_4, %c0_5] : memref<4x8x512xf32, #tpu.memory_space<vmem>>, vector<1x8x512xf32>
    %3 = vector.shape_cast %2 : vector<1x8x512xf32> to vector<8x512xf32>
    %4 = vector.extract_strided_slice %0 {offsets = [0, 0], sizes = [1, 512], strides = [1, 1]} : vector<4x512xf32> to vector<1x512xf32>
    %5 = vector.broadcast %4 : vector<1x512xf32> to vector<8x512xf32>
    %6 = arith.mulf %3, %5 : vector<8x512xf32>
    %7 = arith.addf %1, %6 : vector<8x512xf32>
    %c1 = arith.constant 1 : index
    %c0_6 = arith.constant 0 : index
    %c0_7 = arith.constant 0 : index
    %8 = vector.load %arg2[%c1, %c0_6, %c0_7] : memref<4x8x512xf32, #tpu.memory_space<vmem>>, vector<1x8x512xf32>
    %9 = vector.shape_cast %8 : vector<1x8x512xf32> to vector<8x512xf32>
    %10 = vector.extract_strided_slice %0 {offsets = [1, 0], sizes = [1, 512], strides = [1, 1]} : vector<4x512xf32> to vector<1x512xf32>
    %11 = vector.broadcast %10 : vector<1x512xf32> to vector<8x512xf32>
    %12 = arith.mulf %9, %11 : vector<8x512xf32>
    %13 = arith.addf %7, %12 : vector<8x512xf32>
    %c2 = arith.constant 2 : index
    %c0_8 = arith.constant 0 : index
    %c0_9 = arith.constant 0 : index
    %14 = vector.load %arg2[%c2, %c0_8, %c0_9] : memref<4x8x512xf32, #tpu.memory_space<vmem>>, vector<1x8x512xf32>
    %15 = vector.shape_cast %14 : vector<1x8x512xf32> to vector<8x512xf32>
    %16 = vector.extract_strided_slice %0 {offsets = [2, 0], sizes = [1, 512], strides = [1, 1]} : vector<4x512xf32> to vector<1x512xf32>
    %17 = vector.broadcast %16 : vector<1x512xf32> to vector<8x512xf32>
    %18 = arith.mulf %15, %17 : vector<8x512xf32>
    %19 = arith.addf %13, %18 : vector<8x512xf32>
    %c3 = arith.constant 3 : index
    %c0_10 = arith.constant 0 : index
    %c0_11 = arith.constant 0 : index
    %20 = vector.load %arg2[%c3, %c0_10, %c0_11] : memref<4x8x512xf32, #tpu.memory_space<vmem>>, vector<1x8x512xf32>
    %21 = vector.shape_cast %20 : vector<1x8x512xf32> to vector<8x512xf32>
    %22 = vector.extract_strided_slice %0 {offsets = [3, 0], sizes = [1, 512], strides = [1, 1]} : vector<4x512xf32> to vector<1x512xf32>
    %23 = vector.broadcast %22 : vector<1x512xf32> to vector<8x512xf32>
    %24 = arith.mulf %21, %23 : vector<8x512xf32>
    %25 = arith.addf %19, %24 : vector<8x512xf32>
    %cst = arith.constant 0.000000e+00 : f32
    %26 = vector.broadcast %cst : f32 to vector<8x512xf32>
    %27 = arith.maximumf %25, %26 : vector<8x512xf32>
    %c0_12 = arith.constant 0 : index
    %c0_13 = arith.constant 0 : index
    %28 = vector.load %arg5[%c0_12, %c0_13] : memref<8x512xf32, #tpu.memory_space<vmem>>, vector<8x512xf32>
    %c17_i32 = arith.constant 17 : i32
    %29 = tpu.dynamic_rotate %27 by %c17_i32 dim 1 : vector<8x512xf32>, i32 -> vector<8x512xf32>
    %c0_14 = arith.constant 0 : index
    %c0_15 = arith.constant 0 : index
    %c0_16 = arith.constant 0 : index
    %30 = vector.load %arg4[%c0_14, %c0_15, %c0_16] : memref<9x8x512xf32, #tpu.memory_space<vmem>>, vector<1x8x512xf32>
    %31 = vector.shape_cast %30 : vector<1x8x512xf32> to vector<8x512xf32>
    %32 = arith.mulf %29, %31 : vector<8x512xf32>
    %33 = arith.addf %28, %32 : vector<8x512xf32>
    %c16_i32 = arith.constant 16 : i32
    %34 = tpu.dynamic_rotate %27 by %c16_i32 dim 1 : vector<8x512xf32>, i32 -> vector<8x512xf32>
    %c1_17 = arith.constant 1 : index
    %c0_18 = arith.constant 0 : index
    %c0_19 = arith.constant 0 : index
    %35 = vector.load %arg4[%c1_17, %c0_18, %c0_19] : memref<9x8x512xf32, #tpu.memory_space<vmem>>, vector<1x8x512xf32>
    %36 = vector.shape_cast %35 : vector<1x8x512xf32> to vector<8x512xf32>
    %37 = arith.mulf %34, %36 : vector<8x512xf32>
    %38 = arith.addf %33, %37 : vector<8x512xf32>
    %c15_i32 = arith.constant 15 : i32
    %39 = tpu.dynamic_rotate %27 by %c15_i32 dim 1 : vector<8x512xf32>, i32 -> vector<8x512xf32>
    %c2_20 = arith.constant 2 : index
    %c0_21 = arith.constant 0 : index
    %c0_22 = arith.constant 0 : index
    %40 = vector.load %arg4[%c2_20, %c0_21, %c0_22] : memref<9x8x512xf32, #tpu.memory_space<vmem>>, vector<1x8x512xf32>
    %41 = vector.shape_cast %40 : vector<1x8x512xf32> to vector<8x512xf32>
    %42 = arith.mulf %39, %41 : vector<8x512xf32>
    %43 = arith.addf %38, %42 : vector<8x512xf32>
    %c1_i32 = arith.constant 1 : i32
    %44 = tpu.dynamic_rotate %27 by %c1_i32 dim 1 : vector<8x512xf32>, i32 -> vector<8x512xf32>
    %c3_23 = arith.constant 3 : index
    %c0_24 = arith.constant 0 : index
    %c0_25 = arith.constant 0 : index
    %45 = vector.load %arg4[%c3_23, %c0_24, %c0_25] : memref<9x8x512xf32, #tpu.memory_space<vmem>>, vector<1x8x512xf32>
    %46 = vector.shape_cast %45 : vector<1x8x512xf32> to vector<8x512xf32>
    %47 = arith.mulf %44, %46 : vector<8x512xf32>
    %48 = arith.addf %43, %47 : vector<8x512xf32>
    %c4 = arith.constant 4 : index
    %c0_26 = arith.constant 0 : index
    %c0_27 = arith.constant 0 : index
    %49 = vector.load %arg4[%c4, %c0_26, %c0_27] : memref<9x8x512xf32, #tpu.memory_space<vmem>>, vector<1x8x512xf32>
    %50 = vector.shape_cast %49 : vector<1x8x512xf32> to vector<8x512xf32>
    %51 = arith.mulf %27, %50 : vector<8x512xf32>
    %52 = arith.addf %48, %51 : vector<8x512xf32>
    %c511_i32 = arith.constant 511 : i32
    %53 = tpu.dynamic_rotate %27 by %c511_i32 dim 1 : vector<8x512xf32>, i32 -> vector<8x512xf32>
    %c5 = arith.constant 5 : index
    %c0_28 = arith.constant 0 : index
    %c0_29 = arith.constant 0 : index
    %54 = vector.load %arg4[%c5, %c0_28, %c0_29] : memref<9x8x512xf32, #tpu.memory_space<vmem>>, vector<1x8x512xf32>
    %55 = vector.shape_cast %54 : vector<1x8x512xf32> to vector<8x512xf32>
    %56 = arith.mulf %53, %55 : vector<8x512xf32>
    %57 = arith.addf %52, %56 : vector<8x512xf32>
    %c497_i32 = arith.constant 497 : i32
    %58 = tpu.dynamic_rotate %27 by %c497_i32 dim 1 : vector<8x512xf32>, i32 -> vector<8x512xf32>
    %c6 = arith.constant 6 : index
    %c0_30 = arith.constant 0 : index
    %c0_31 = arith.constant 0 : index
    %59 = vector.load %arg4[%c6, %c0_30, %c0_31] : memref<9x8x512xf32, #tpu.memory_space<vmem>>, vector<1x8x512xf32>
    %60 = vector.shape_cast %59 : vector<1x8x512xf32> to vector<8x512xf32>
    %61 = arith.mulf %58, %60 : vector<8x512xf32>
    %62 = arith.addf %57, %61 : vector<8x512xf32>
    %c496_i32 = arith.constant 496 : i32
    %63 = tpu.dynamic_rotate %27 by %c496_i32 dim 1 : vector<8x512xf32>, i32 -> vector<8x512xf32>
    %c7 = arith.constant 7 : index
    %c0_32 = arith.constant 0 : index
    %c0_33 = arith.constant 0 : index
    %64 = vector.load %arg4[%c7, %c0_32, %c0_33] : memref<9x8x512xf32, #tpu.memory_space<vmem>>, vector<1x8x512xf32>
    %65 = vector.shape_cast %64 : vector<1x8x512xf32> to vector<8x512xf32>
    %66 = arith.mulf %63, %65 : vector<8x512xf32>
    %67 = arith.addf %62, %66 : vector<8x512xf32>
    %c495_i32 = arith.constant 495 : i32
    %68 = tpu.dynamic_rotate %27 by %c495_i32 dim 1 : vector<8x512xf32>, i32 -> vector<8x512xf32>
    %c8 = arith.constant 8 : index
    %c0_34 = arith.constant 0 : index
    %c0_35 = arith.constant 0 : index
    %69 = vector.load %arg4[%c8, %c0_34, %c0_35] : memref<9x8x512xf32, #tpu.memory_space<vmem>>, vector<1x8x512xf32>
    %70 = vector.shape_cast %69 : vector<1x8x512xf32> to vector<8x512xf32>
    %71 = arith.mulf %68, %70 : vector<8x512xf32>
    %72 = arith.addf %67, %71 : vector<8x512xf32>
    %cst_36 = arith.constant 0.000000e+00 : f32
    %73 = vector.broadcast %cst_36 : f32 to vector<8x512xf32>
    %74 = arith.maximumf %72, %73 : vector<8x512xf32>
    %c0_37 = arith.constant 0 : index
    %c0_38 = arith.constant 0 : index
    %75 = vector.load %arg6[%c0_37, %c0_38] : memref<8x512xf32, #tpu.memory_space<vmem>>, vector<8x512xf32>
    tpu.vector_store %arg6[%c0_37, %c0_38], %74 {strides = array<i32>} : memref<8x512xf32, #tpu.memory_space<vmem>>, vector<8x512xf32>,
    return
  }
  func.func @transform_0(%arg0: i32) -> (i32, i32) {
    %c0_i32 = arith.constant 0 : i32
    %c0_i32_0 = arith.constant 0 : i32
    return %c0_i32, %arg0 : i32, i32
  }
  func.func @transform_1(%arg0: i32) -> (i32, i32, i32) {
    %c0_i32 = arith.constant 0 : i32
    %c0_i32_0 = arith.constant 0 : i32
    %c0_i32_1 = arith.constant 0 : i32
    %c0_i32_2 = arith.constant 0 : i32
    return %c0_i32, %c0_i32_0, %c0_i32_1 : i32, i32, i32
  }
  func.func @transform_2(%arg0: i32) -> (i32, i32) {
    %c0_i32 = arith.constant 0 : i32
    %c0_i32_0 = arith.constant 0 : i32
    %c0_i32_1 = arith.constant 0 : i32
    return %c0_i32, %c0_i32_0 : i32, i32
  }
  func.func @transform_3(%arg0: i32) -> (i32, i32, i32) {
    %c0_i32 = arith.constant 0 : i32
    %c0_i32_0 = arith.constant 0 : i32
    %c0_i32_1 = arith.constant 0 : i32
    %c0_i32_2 = arith.constant 0 : i32
    return %c0_i32, %c0_i32_0, %c0_i32_1 : i32, i32, i32
  }
  func.func @transform_4(%arg0: i32) -> (i32, i32) {
    %c0_i32 = arith.constant 0 : i32
    %c0_i32_0 = arith.constant 0 : i32
    %c0_i32_1 = arith.constant 0 : i32
    return %c0_i32, %c0_i32_0 : i32, i32
  }
  func.func @transform_5(%arg0: i32) -> (i32, i32) {
    %c0_i32 = arith.constant 0 : i32
    %c0_i32_0 = arith.constant 0 : i32
    return %c0_i32, %arg0 : i32, i32
  }
}

</mosaic_0001>

<llo_original>
// kernel: tpu_custom_call.1
$region0: #{tpu_custom_call.1}
  #allocation0 [shape = 'u32[]', space=smem, size = 0x4, offset = 0x4, fixed_abs, tag = 'smem constant byte address 0x4 - core index']
  #allocation1 [shape = 'u32[144,128]{1,0:T(1,128)}', space=vmem, size = 0x12000, scoped, tag = 'internal scratch']
  %s0 = inlined_call_operand.hbm [shape: f32[4,512], index: 0, kind: input, shape index: {}]
  %s1 = inlined_call_operand.hbm [shape: f32[4,8,512], index: 1, kind: input, shape index: {}]
  %s2 = inlined_call_operand.hbm [shape: f32[8,512], index: 2, kind: input, shape index: {}]
  %s3 = inlined_call_operand.hbm [shape: f32[9,8,512], index: 3, kind: input, shape index: {}]
  %s4 = inlined_call_operand.hbm [shape: f32[8,512], index: 4, kind: input, shape index: {}]
  %s5 = inlined_call_operand.hbm [shape: f32[8,512], index: 5, kind: output, shape index: {}]
  %s6 = sld [smem:[#allocation0]]
  $region50: #{tpu_custom_call.1} parent=0
    _
  %s8 = ssub.s32 1, %s6
  %s9 = scalar_select 0, %s8, %s6
  $region1: #{tpu_custom_call.1} parent=0
    #allocation2 [shape = 'u8[8192]{0}', space=vmem, size = 0x2000, scoped, tag = 'input window, operand 0, single buffered']
    #allocation3 [shape = 's32[1]{0}', space=sflag, size = 0x4, scoped, tag = 'scoped memory for tpu_custom_call.1']
    #allocation4 [shape = 's32[1]{0}', space=sflag, size = 0x4, scoped, tag = 'scoped memory for tpu_custom_call.1']
    #allocation5 [shape = 'u8[65536]{0}', space=vmem, size = 0x10000, scoped, tag = 'input window, operand 1, single buffered']
    #allocation6 [shape = 's32[1]{0}', space=sflag, size = 0x4, scoped, tag = 'scoped memory for tpu_custom_call.1']
    #allocation7 [shape = 'u8[16384]{0}', space=vmem, size = 0x4000, scoped, tag = 'input window, operand 2, single buffered']
    #allocation8 [shape = 'u8[147456]{0}', space=vmem, size = 0x24000, scoped, tag = 'input window, operand 3, single buffered']
    #allocation9 [shape = 's32[1]{0}', space=sflag, size = 0x4, scoped, tag = 'scoped memory for tpu_custom_call.1']
    #allocation10 [shape = 'u8[16384]{0}', space=vmem, size = 0x4000, scoped, tag = 'input window, operand 4, single buffered']
    #allocation11 [shape = 'u8[16384]{0}', space=vmem, size = 0x4000, scoped, tag = 'output window, operand 0, single buffered']
    %10 = vsyncpa [#allocation3], 0
    %11 = vsyncpa [#allocation6], 0
    %12 = vsyncpa [#allocation9], 0
    %13 = vsyncpa [#allocation4], 0
    // Predicated region
    $region2: #{tpu_custom_call.1} parent=1 // pred_check
      _
    $region3: #{tpu_custom_call.1} parent=1 // pred_check_branch
      %15 = sbr.rel (0) target = $region5
    $region4: #{tpu_custom_call.1} parent=1 // pred_region
      %s17 = ssub.s32 256, 256
      %18 = vsyncadd [#allocation3], %s17
      %s20 = sshll.u32 [#allocation2], 4
      %s21 = int_to_ptr.vmem [resolvable:$true] %s20
      %23 = dma.hbm_to_vmem [thread:$0]  %s0, 256, %s21, [#allocation3]
    $region5: #{tpu_custom_call.1} parent=1 // pred_fallthru
      _
    // Predicated region
    $region6: #{tpu_custom_call.1} parent=1 // pred_check
      _
    $region7: #{tpu_custom_call.1} parent=1 // pred_check_branch
      %25 = sbr.rel (0) target = $region9
    $region8: #{tpu_custom_call.1} parent=1 // pred_region
      %s27 = ssub.s32 2048, 2048
      %28 = vsyncadd [#allocation6], %s27
      %s29 = sshll.u32 [#allocation5], 4
      %s30 = int_to_ptr.vmem [resolvable:$true] %s29
      %35 = dma.hbm_to_vmem [thread:$0]  %s1, 2048, %s30, [#allocation6], 512, 512, 32
    $region9: #{tpu_custom_call.1} parent=1 // pred_fallthru
      _
    // Predicated region
    $region10: #{tpu_custom_call.1} parent=1 // pred_check
      _
    $region11: #{tpu_custom_call.1} parent=1 // pred_check_branch
      %37 = sbr.rel (0) target = $region13
    $region12: #{tpu_custom_call.1} parent=1 // pred_region
      %s39 = ssub.s32 512, 512
      %40 = vsyncadd [#allocation6], %s39
      %s42 = sshll.u32 [#allocation7], 4
      %s43 = int_to_ptr.vmem [resolvable:$true] %s42
      %45 = dma.hbm_to_vmem [thread:$0]  %s2, 512, %s43, [#allocation6]
    $region13: #{tpu_custom_call.1} parent=1 // pred_fallthru
      _
    // Predicated region
    $region14: #{tpu_custom_call.1} parent=1 // pred_check
      _
    $region15: #{tpu_custom_call.1} parent=1 // pred_check_branch
      %47 = sbr.rel (0) target = $region17
    $region16: #{tpu_custom_call.1} parent=1 // pred_region
      %s49 = ssub.s32 4608, 4608
      %50 = vsyncadd [#allocation9], %s49
      %s51 = sshll.u32 [#allocation8], 4
      %s52 = int_to_ptr.vmem [resolvable:$true] %s51
      %57 = dma.hbm_to_vmem [thread:$0]  %s3, 4608, %s52, [#allocation9], 512, 512, 32
    $region17: #{tpu_custom_call.1} parent=1 // pred_fallthru
      _
    // Predicated region
    $region18: #{tpu_custom_call.1} parent=1 // pred_check
      _
    $region19: #{tpu_custom_call.1} parent=1 // pred_check_branch
      %59 = sbr.rel (0) target = $region21
    $region20: #{tpu_custom_call.1} parent=1 // pred_region
      %s61 = ssub.s32 512, 512
      %62 = vsyncadd [#allocation9], %s61
      %s64 = sshll.u32 [#allocation10], 4
      %s65 = int_to_ptr.vmem [resolvable:$true] %s64
      %67 = dma.hbm_to_vmem [thread:$0]  %s4, 512, %s65, [#allocation9]
    $region21: #{tpu_custom_call.1} parent=1 // pred_fallthru
      _
    // Predicated region
    $region22: #{tpu_custom_call.1} parent=1 // pred_check
      _
    $region23: #{tpu_custom_call.1} parent=1 // pred_check_branch
      %69 = sbr.rel (0) target = $region25
    $region24: #{tpu_custom_call.1} parent=1 // pred_region
      %70 = dma.done [#allocation3], 256
    $region25: #{tpu_custom_call.1} parent=1 // pred_fallthru
      _
    // Predicated region
    $region26: #{tpu_custom_call.1} parent=1 // pred_check
      _
    $region27: #{tpu_custom_call.1} parent=1 // pred_check_branch
      %72 = sbr.rel (0) target = $region29
    $region28: #{tpu_custom_call.1} parent=1 // pred_region
      %73 = dma.done [#allocation6], 2048
    $region29: #{tpu_custom_call.1} parent=1 // pred_fallthru
      _
    // Predicated region
    $region30: #{tpu_custom_call.1} parent=1 // pred_check
      _
    $region31: #{tpu_custom_call.1} parent=1 // pred_check_branch
      %75 = sbr.rel (0) target = $region33
    $region32: #{tpu_custom_call.1} parent=1 // pred_region
      %76 = dma.done [#allocation6], 512
    $region33: #{tpu_custom_call.1} parent=1 // pred_fallthru
      _
    // Predicated region
    $region34: #{tpu_custom_call.1} parent=1 // pred_check
      _
    $region35: #{tpu_custom_call.1} parent=1 // pred_check_branch
      %78 = sbr.rel (0) target = $region37
    $region36: #{tpu_custom_call.1} parent=1 // pred_region
      %79 = dma.done [#allocation9], 4608
    $region37: #{tpu_custom_call.1} parent=1 // pred_fallthru
      _
    // Predicated region
    $region38: #{tpu_custom_call.1} parent=1 // pred_check
      _
    $region39: #{tpu_custom_call.1} parent=1 // pred_check_branch
      %81 = sbr.rel (0) target = $region41
    $region40: #{tpu_custom_call.1} parent=1 // pred_region
      %82 = dma.done [#allocation9], 512
    $region41: #{tpu_custom_call.1} parent=1 // pred_fallthru
      _
    %v83 = vld [vmem:[#allocation2] sm:$0xff]
    %v84 = vld [vmem:[#allocation2 + $0x8] sm:$0xff]
    %v85 = vld [vmem:[#allocation7] sm:$0xff]
    %v86 = vld [vmem:[#allocation7 + $0x8] sm:$0xff]
    %v87 = vld [vmem:[#allocation7 + $0x10] sm:$0xff]
    %v88 = vld [vmem:[#allocation7 + $0x18] sm:$0xff]
    %v89 = vld [vmem:[#allocation5] sm:$0xff]
    %v90 = vld [vmem:[#allocation5 + $0x8] sm:$0xff]
    %v91 = vld [vmem:[#allocation5 + $0x10] sm:$0xff]
    %v92 = vld [vmem:[#allocation5 + $0x18] sm:$0xff]
    %v95 = vlaneseq
    %v96 = vshrl.u32 %v95, 7
    %v97 = vsub.s32 0, %v96
    %v98 = vrot.slane %v83, %v97
    %v99 = vlaneseq
    %v100 = vshrl.u32 %v99, 7
    %v101 = vsub.s32 4, %v100
    %v102 = vrot.slane %v83, %v101
    %v103 = vlaneseq
    %v104 = vshrl.u32 %v103, 7
    %v105 = vsub.s32 0, %v104
    %v106 = vrot.slane %v84, %v105
    %v107 = vlaneseq
    %v108 = vshrl.u32 %v107, 7
    %v109 = vsub.s32 4, %v108
    %v110 = vrot.slane %v84, %v109
    %v115 = vlaneseq
    %v116 = vshrl.u32 %v115, 7
    %v117 = vsub.s32 0, %v116
    %v118 = vrot.slane %v98, %v117
    %v119 = vlaneseq
    %v120 = vshrl.u32 %v119, 7
    %v121 = vsub.s32 0, %v120
    %v122 = vrot.slane %v102, %v121
    %v123 = vlaneseq
    %v124 = vshrl.u32 %v123, 7
    %v125 = vsub.s32 0, %v124
    %v126 = vrot.slane %v106, %v125
    %v127 = vlaneseq
    %v128 = vshrl.u32 %v127, 7
    %v129 = vsub.s32 0, %v128
    %v130 = vrot.slane %v110, %v129
    %v131 = vmul.f32 %v89, %v118
    %v132 = vmul.f32 %v90, %v122
    %v133 = vmul.f32 %v91, %v126
    %v134 = vmul.f32 %v92, %v130
    %v135 = vadd.f32 %v85, %v131
    %v136 = vadd.f32 %v86, %v132
    %v137 = vadd.f32 %v87, %v133
    %v138 = vadd.f32 %v88, %v134
    %s139 = scalar_lea.vmem [#allocation5], 32
    %v140 = vld [vmem:[%s139] sm:$0xff]
    %v141 = vld [vmem:[%s139 + $0x8] sm:$0xff]
    %v142 = vld [vmem:[%s139 + $0x10] sm:$0xff]
    %v143 = vld [vmem:[%s139 + $0x18] sm:$0xff]
    %v144 = vlaneseq
    %v145 = vshrl.u32 %v144, 7
    %v146 = vsub.s32 1, %v145
    %v147 = vrot.slane %v83, %v146
    %v148 = vlaneseq
    %v149 = vshrl.u32 %v148, 7
    %v150 = vsub.s32 5, %v149
    %v151 = vrot.slane %v83, %v150
    %v152 = vlaneseq
    %v153 = vshrl.u32 %v152, 7
    %v154 = vsub.s32 1, %v153
    %v155 = vrot.slane %v84, %v154
    %v156 = vlaneseq
    %v157 = vshrl.u32 %v156, 7
    %v158 = vsub.s32 5, %v157
    %v159 = vrot.slane %v84, %v158
    %v164 = vlaneseq
    %v165 = vshrl.u32 %v164, 7
    %v166 = vsub.s32 1, %v165
    %v167 = vrot.slane %v147, %v166
    %v168 = vlaneseq
    %v169 = vshrl.u32 %v168, 7
    %v170 = vsub.s32 1, %v169
    %v171 = vrot.slane %v151, %v170
    %v172 = vlaneseq
    %v173 = vshrl.u32 %v172, 7
    %v174 = vsub.s32 1, %v173
    %v175 = vrot.slane %v155, %v174
    %v176 = vlaneseq
    %v177 = vshrl.u32 %v176, 7
    %v178 = vsub.s32 1, %v177
    %v179 = vrot.slane %v159, %v178
    %v180 = vmul.f32 %v140, %v167
    %v181 = vmul.f32 %v141, %v171
    %v182 = vmul.f32 %v142, %v175
    %v183 = vmul.f32 %v143, %v179
    %v184 = vadd.f32 %v135, %v180
    %v185 = vadd.f32 %v136, %v181
    %v186 = vadd.f32 %v137, %v182
    %v187 = vadd.f32 %v138, %v183
    %s188 = scalar_lea.vmem [#allocation5], 64
    %v189 = vld [vmem:[%s188] sm:$0xff]
    %v190 = vld [vmem:[%s188 + $0x8] sm:$0xff]
    %v191 = vld [vmem:[%s188 + $0x10] sm:$0xff]
    %v192 = vld [vmem:[%s188 + $0x18] sm:$0xff]
    %v193 = vlaneseq
    %v194 = vshrl.u32 %v193, 7
    %v195 = vsub.s32 2, %v194
    %v196 = vrot.slane %v83, %v195
    %v197 = vlaneseq
    %v198 = vshrl.u32 %v197, 7
    %v199 = vsub.s32 6, %v198
    %v200 = vrot.slane %v83, %v199
    %v201 = vlaneseq
    %v202 = vshrl.u32 %v201, 7
    %v203 = vsub.s32 2, %v202
    %v204 = vrot.slane %v84, %v203
    %v205 = vlaneseq
    %v206 = vshrl.u32 %v205, 7
    %v207 = vsub.s32 6, %v206
    %v208 = vrot.slane %v84, %v207
    %v213 = vlaneseq
    %v214 = vshrl.u32 %v213, 7
    %v215 = vsub.s32 2, %v214
    %v216 = vrot.slane %v196, %v215
    %v217 = vlaneseq
    %v218 = vshrl.u32 %v217, 7
    %v219 = vsub.s32 2, %v218
    %v220 = vrot.slane %v200, %v219
    %v221 = vlaneseq
    %v222 = vshrl.u32 %v221, 7
    %v223 = vsub.s32 2, %v222
    %v224 = vrot.slane %v204, %v223
    %v225 = vlaneseq
    %v226 = vshrl.u32 %v225, 7
    %v227 = vsub.s32 2, %v226
    %v228 = vrot.slane %v208, %v227
    %v229 = vmul.f32 %v189, %v216
    %v230 = vmul.f32 %v190, %v220
    %v231 = vmul.f32 %v191, %v224
    %v232 = vmul.f32 %v192, %v228
    %v233 = vadd.f32 %v184, %v229
    %v234 = vadd.f32 %v185, %v230
    %v235 = vadd.f32 %v186, %v231
    %v236 = vadd.f32 %v187, %v232
    %s237 = scalar_lea.vmem [#allocation5], 96
    %v238 = vld [vmem:[%s237] sm:$0xff]
    %v239 = vld [vmem:[%s237 + $0x8] sm:$0xff]
    %v240 = vld [vmem:[%s237 + $0x10] sm:$0xff]
    %v241 = vld [vmem:[%s237 + $0x18] sm:$0xff]
    %v242 = vlaneseq
    %v243 = vshrl.u32 %v242, 7
    %v244 = vsub.s32 3, %v243
    %v245 = vrot.slane %v83, %v244
    %v246 = vlaneseq
    %v247 = vshrl.u32 %v246, 7
    %v248 = vsub.s32 7, %v247
    %v249 = vrot.slane %v83, %v248
    %v250 = vlaneseq
    %v251 = vshrl.u32 %v250, 7
    %v252 = vsub.s32 3, %v251
    %v253 = vrot.slane %v84, %v252
    %v254 = vlaneseq
    %v255 = vshrl.u32 %v254, 7
    %v256 = vsub.s32 7, %v255
    %v257 = vrot.slane %v84, %v256
    %v262 = vlaneseq
    %v263 = vshrl.u32 %v262, 7
    %v264 = vsub.s32 3, %v263
    %v265 = vrot.slane %v245, %v264
    %v266 = vlaneseq
    %v267 = vshrl.u32 %v266, 7
    %v268 = vsub.s32 3, %v267
    %v269 = vrot.slane %v249, %v268
    %v270 = vlaneseq
    %v271 = vshrl.u32 %v270, 7
    %v272 = vsub.s32 3, %v271
    %v273 = vrot.slane %v253, %v272
    %v274 = vlaneseq
    %v275 = vshrl.u32 %v274, 7
    %v276 = vsub.s32 3, %v275
    %v277 = vrot.slane %v257, %v276
    %v278 = vmul.f32 %v238, %v265
    %v279 = vmul.f32 %v239, %v269
    %v280 = vmul.f32 %v240, %v273
    %v281 = vmul.f32 %v241, %v277
    %v282 = vadd.f32 %v233, %v278
    %v283 = vadd.f32 %v234, %v279
    %v284 = vadd.f32 %v235, %v280
    %v285 = vadd.f32 %v236, %v281
    %v286 = vmax.f32 %v282, 0.0
    %v287 = vmax.f32 %v283, 0.0
    %v288 = vmax.f32 %v284, 0.0
    %v289 = vmax.f32 %v285, 0.0
    %v290 = vld [vmem:[#allocation10] sm:$0xff]
    %v291 = vld [vmem:[#allocation10 + $0x8] sm:$0xff]
    %v292 = vld [vmem:[#allocation10 + $0x10] sm:$0xff]
    %v293 = vld [vmem:[#allocation10 + $0x18] sm:$0xff]
    %294 = vrot.lane.b32.xlu0 %v286, 17
    %v295 = vpop.permute.xlu0 %294
    %296 = vrot.lane.b32.xlu0 %v287, 17
    %v297 = vpop.permute.xlu0 %296
    %298 = vrot.lane.b32.xlu0 %v288, 17
    %v299 = vpop.permute.xlu0 %298
    %300 = vrot.lane.b32.xlu0 %v289, 17
    %v301 = vpop.permute.xlu0 %300
    %v302 = vlaneseq
    %v303 = vand.u32 %v302, 127
    %vm304 = vcmp.lt.s32.totalorder %v303, 17
    %v305 = vsel %vm304, %v299, %v301
    %v306 = vsel %vm304, %v297, %v299
    %v307 = vsel %vm304, %v295, %v297
    %v308 = vsel %vm304, %v301, %v295
    %v309 = vld [vmem:[#allocation8] sm:$0xff]
    %v310 = vld [vmem:[#allocation8 + $0x8] sm:$0xff]
    %v311 = vld [vmem:[#allocation8 + $0x10] sm:$0xff]
    %v312 = vld [vmem:[#allocation8 + $0x18] sm:$0xff]
    %v313 = vmul.f32 %v308, %v309
    %v314 = vmul.f32 %v307, %v310
    %v315 = vmul.f32 %v306, %v311
    %v316 = vmul.f32 %v305, %v312
    %v317 = vadd.f32 %v290, %v313
    %v318 = vadd.f32 %v291, %v314
    %v319 = vadd.f32 %v292, %v315
    %v320 = vadd.f32 %v293, %v316
    %321 = vrot.lane.b32.xlu0 %v286, 16
    %v322 = vpop.permute.xlu0 %321
    %323 = vrot.lane.b32.xlu0 %v287, 16
    %v324 = vpop.permute.xlu0 %323
    %325 = vrot.lane.b32.xlu0 %v288, 16
    %v326 = vpop.permute.xlu0 %325
    %327 = vrot.lane.b32.xlu0 %v289, 16
    %v328 = vpop.permute.xlu0 %327
    %vm329 = vcmp.lt.s32.totalorder %v303, 16
    %v330 = vsel %vm329, %v326, %v328
    %v331 = vsel %vm329, %v324, %v326
    %v332 = vsel %vm329, %v322, %v324
    %v333 = vsel %vm329, %v328, %v322
    %s334 = scalar_lea.vmem [#allocation8], 32
    %v335 = vld [vmem:[%s334] sm:$0xff]
    %v336 = vld [vmem:[%s334 + $0x8] sm:$0xff]
    %v337 = vld [vmem:[%s334 + $0x10] sm:$0xff]
    %v338 = vld [vmem:[%s334 + $0x18] sm:$0xff]
    %v339 = vmul.f32 %v333, %v335
    %v340 = vmul.f32 %v332, %v336
    %v341 = vmul.f32 %v331, %v337
    %v342 = vmul.f32 %v330, %v338
    %v343 = vadd.f32 %v317, %v339
    %v344 = vadd.f32 %v318, %v340
    %v345 = vadd.f32 %v319, %v341
    %v346 = vadd.f32 %v320, %v342
    %347 = vrot.lane.b32.xlu0 %v286, 15
    %v348 = vpop.permute.xlu0 %347
    %349 = vrot.lane.b32.xlu0 %v287, 15
    %v350 = vpop.permute.xlu0 %349
    %351 = vrot.lane.b32.xlu0 %v288, 15
    %v352 = vpop.permute.xlu0 %351
    %353 = vrot.lane.b32.xlu0 %v289, 15
    %v354 = vpop.permute.xlu0 %353
    %vm355 = vcmp.lt.s32.totalorder %v303, 15
    %v356 = vsel %vm355, %v352, %v354
    %v357 = vsel %vm355, %v350, %v352
    %v358 = vsel %vm355, %v348, %v350
    %v359 = vsel %vm355, %v354, %v348
    %s360 = scalar_lea.vmem [#allocation8], 64
    %v361 = vld [vmem:[%s360] sm:$0xff]
    %v362 = vld [vmem:[%s360 + $0x8] sm:$0xff]
    %v363 = vld [vmem:[%s360 + $0x10] sm:$0xff]
    %v364 = vld [vmem:[%s360 + $0x18] sm:$0xff]
    %v365 = vmul.f32 %v359, %v361
    %v366 = vmul.f32 %v358, %v362
    %v367 = vmul.f32 %v357, %v363
    %v368 = vmul.f32 %v356, %v364
    %v369 = vadd.f32 %v343, %v365
    %v370 = vadd.f32 %v344, %v366
    %v371 = vadd.f32 %v345, %v367
    %v372 = vadd.f32 %v346, %v368
    %373 = vrot.lane.b32.xlu0 %v286, 1
    %v374 = vpop.permute.xlu0 %373
    %375 = vrot.lane.b32.xlu0 %v287, 1
    %v376 = vpop.permute.xlu0 %375
    %377 = vrot.lane.b32.xlu0 %v288, 1
    %v378 = vpop.permute.xlu0 %377
    %379 = vrot.lane.b32.xlu0 %v289, 1
    %v380 = vpop.permute.xlu0 %379
    %vm381 = vcmp.lt.s32.totalorder %v303, 1
    %v382 = vsel %vm381, %v378, %v380
    %v383 = vsel %vm381, %v376, %v378
    %v384 = vsel %vm381, %v374, %v376
    %v385 = vsel %vm381, %v380, %v374
    %s386 = scalar_lea.vmem [#allocation8], 96
    %v387 = vld [vmem:[%s386] sm:$0xff]
    %v388 = vld [vmem:[%s386 + $0x8] sm:$0xff]
    %v389 = vld [vmem:[%s386 + $0x10] sm:$0xff]
    %v390 = vld [vmem:[%s386 + $0x18] sm:$0xff]
    %v391 = vmul.f32 %v385, %v387
    %v392 = vmul.f32 %v384, %v388
    %v393 = vmul.f32 %v383, %v389
    %v394 = vmul.f32 %v382, %v390
    %v395 = vadd.f32 %v369, %v391
    %v396 = vadd.f32 %v370, %v392
    %v397 = vadd.f32 %v371, %v393
    %v398 = vadd.f32 %v372, %v394
    %s399 = scalar_lea.vmem [#allocation8], 128
    %v400 = vld [vmem:[%s399] sm:$0xff]
    %v401 = vld [vmem:[%s399 + $0x8] sm:$0xff]
    %v402 = vld [vmem:[%s399 + $0x10] sm:$0xff]
    %v403 = vld [vmem:[%s399 + $0x18] sm:$0xff]
    %v404 = vmul.f32 %v286, %v400
    %v405 = vmul.f32 %v287, %v401
    %v406 = vmul.f32 %v288, %v402
    %v407 = vmul.f32 %v289, %v403
    %v408 = vadd.f32 %v395, %v404
    %v409 = vadd.f32 %v396, %v405
    %v410 = vadd.f32 %v397, %v406
    %v411 = vadd.f32 %v398, %v407
    %412 = vrot.lane.b32.xlu0 %v286, 127
    %v413 = vpop.permute.xlu0 %412
    %414 = vrot.lane.b32.xlu0 %v287, 127
    %v415 = vpop.permute.xlu0 %414
    %416 = vrot.lane.b32.xlu0 %v288, 127
    %v417 = vpop.permute.xlu0 %416
    %418 = vrot.lane.b32.xlu0 %v289, 127
    %v419 = vpop.permute.xlu0 %418
    %vm420 = vcmp.lt.s32.totalorder %v303, 127
    %v421 = vsel %vm420, %v417, %v419
    %v422 = vsel %vm420, %v415, %v417
    %v423 = vsel %vm420, %v413, %v415
    %v424 = vsel %vm420, %v419, %v413
    %s425 = scalar_lea.vmem [#allocation8], 160
    %v426 = vld [vmem:[%s425] sm:$0xff]
    %v427 = vld [vmem:[%s425 + $0x8] sm:$0xff]
    %v428 = vld [vmem:[%s425 + $0x10] sm:$0xff]
    %v429 = vld [vmem:[%s425 + $0x18] sm:$0xff]
    %v430 = vmul.f32 %v423, %v426
    %v431 = vmul.f32 %v422, %v427
    %v432 = vmul.f32 %v421, %v428
    %v433 = vmul.f32 %v424, %v429
    %v434 = vadd.f32 %v408, %v430
    %v435 = vadd.f32 %v409, %v431
    %v436 = vadd.f32 %v410, %v432
    %v437 = vadd.f32 %v411, %v433
    %438 = vrot.lane.b32.xlu0 %v286, 113
    %v439 = vpop.permute.xlu0 %438
    %440 = vrot.lane.b32.xlu0 %v287, 113
    %v441 = vpop.permute.xlu0 %440
    %442 = vrot.lane.b32.xlu0 %v288, 113
    %v443 = vpop.permute.xlu0 %442
    %444 = vrot.lane.b32.xlu0 %v289, 113
    %v445 = vpop.permute.xlu0 %444
    %vm446 = vcmp.lt.s32.totalorder %v303, 113
    %v447 = vsel %vm446, %v443, %v445
    %v448 = vsel %vm446, %v441, %v443
    %v449 = vsel %vm446, %v439, %v441
    %v450 = vsel %vm446, %v445, %v439
    %s451 = scalar_lea.vmem [#allocation8], 192
    %v452 = vld [vmem:[%s451] sm:$0xff]
    %v453 = vld [vmem:[%s451 + $0x8] sm:$0xff]
    %v454 = vld [vmem:[%s451 + $0x10] sm:$0xff]
    %v455 = vld [vmem:[%s451 + $0x18] sm:$0xff]
    %v456 = vmul.f32 %v449, %v452
    %v457 = vmul.f32 %v448, %v453
    %v458 = vmul.f32 %v447, %v454
    %v459 = vmul.f32 %v450, %v455
    %v460 = vadd.f32 %v434, %v456
    %v461 = vadd.f32 %v435, %v457
    %v462 = vadd.f32 %v436, %v458
    %v463 = vadd.f32 %v437, %v459
    %464 = vrot.lane.b32.xlu0 %v286, 112
    %v465 = vpop.permute.xlu0 %464
    %466 = vrot.lane.b32.xlu0 %v287, 112
    %v467 = vpop.permute.xlu0 %466
    %468 = vrot.lane.b32.xlu0 %v288, 112
    %v469 = vpop.permute.xlu0 %468
    %470 = vrot.lane.b32.xlu0 %v289, 112
    %v471 = vpop.permute.xlu0 %470
    %vm472 = vcmp.lt.s32.totalorder %v303, 112
    %v473 = vsel %vm472, %v469, %v471
    %v474 = vsel %vm472, %v467, %v469
    %v475 = vsel %vm472, %v465, %v467
    %v476 = vsel %vm472, %v471, %v465
    %s477 = scalar_lea.vmem [#allocation8], 224
    %v478 = vld [vmem:[%s477] sm:$0xff]
    %v479 = vld [vmem:[%s477 + $0x8] sm:$0xff]
    %v480 = vld [vmem:[%s477 + $0x10] sm:$0xff]
    %v481 = vld [vmem:[%s477 + $0x18] sm:$0xff]
    %v482 = vmul.f32 %v475, %v478
    %v483 = vmul.f32 %v474, %v479
    %v484 = vmul.f32 %v473, %v480
    %v485 = vmul.f32 %v476, %v481
    %v486 = vadd.f32 %v460, %v482
    %v487 = vadd.f32 %v461, %v483
    %v488 = vadd.f32 %v462, %v484
    %v489 = vadd.f32 %v463, %v485
    %490 = vrot.lane.b32.xlu0 %v286, 111
    %v491 = vpop.permute.xlu0 %490
    %492 = vrot.lane.b32.xlu0 %v287, 111
    %v493 = vpop.permute.xlu0 %492
    %494 = vrot.lane.b32.xlu0 %v288, 111
    %v495 = vpop.permute.xlu0 %494
    %496 = vrot.lane.b32.xlu0 %v289, 111
    %v497 = vpop.permute.xlu0 %496
    %vm498 = vcmp.lt.s32.totalorder %v303, 111
    %v499 = vsel %vm498, %v495, %v497
    %v500 = vsel %vm498, %v493, %v495
    %v501 = vsel %vm498, %v491, %v493
    %v502 = vsel %vm498, %v497, %v491
    %s503 = scalar_lea.vmem [#allocation8], 256
    %v504 = vld [vmem:[%s503] sm:$0xff]
    %v505 = vld [vmem:[%s503 + $0x8] sm:$0xff]
    %v506 = vld [vmem:[%s503 + $0x10] sm:$0xff]
    %v507 = vld [vmem:[%s503 + $0x18] sm:$0xff]
    %v508 = vmul.f32 %v501, %v504
    %v509 = vmul.f32 %v500, %v505
    %v510 = vmul.f32 %v499, %v506
    %v511 = vmul.f32 %v502, %v507
    %v512 = vadd.f32 %v486, %v508
    %v513 = vadd.f32 %v487, %v509
    %v514 = vadd.f32 %v488, %v510
    %v515 = vadd.f32 %v489, %v511
    %v516 = vmax.f32 %v512, 0.0
    %v517 = vmax.f32 %v513, 0.0
    %v518 = vmax.f32 %v514, 0.0
    %v519 = vmax.f32 %v515, 0.0
    %520 = vst [vmem:[#allocation11] sm:$0xff] %v516
    %521 = vst [vmem:[#allocation11 + $0x8] sm:$0xff] %v517
    %522 = vst [vmem:[#allocation11 + $0x10] sm:$0xff] %v518
    %523 = vst [vmem:[#allocation11 + $0x18] sm:$0xff] %v519
    // Predicated region
    $region42: #{tpu_custom_call.1} parent=1 // pred_check
      _
    $region43: #{tpu_custom_call.1} parent=1 // pred_check_branch
      %525 = sbr.rel (0) target = $region45
    $region44: #{tpu_custom_call.1} parent=1 // pred_region
      %s527 = ssub.s32 512, 512
      %528 = vsyncadd [#allocation4], %s527
      %s530 = sshll.u32 [#allocation11], 4
      %s531 = int_to_ptr.vmem [resolvable:$true] %s530
      %533 = dma.vmem_to_hbm [thread:$0]  %s531, 512, %s5, [#allocation4]
    $region45: #{tpu_custom_call.1} parent=1 // pred_fallthru
      _
    // Predicated region
    $region46: #{tpu_custom_call.1} parent=1 // pred_check
      _
    $region47: #{tpu_custom_call.1} parent=1 // pred_check_branch
      %535 = sbr.rel (0) target = $region49
    $region48: #{tpu_custom_call.1} parent=1 // pred_region
      %536 = dma.done [#allocation4], 512
    $region49: #{tpu_custom_call.1} parent=1 // pred_fallthru
      _
    %537 = vsyncpa [#allocation3], 1
    %538 = vsyncpa [#allocation6], 1
    %539 = vsyncpa [#allocation9], 1
    %540 = vsyncpa [#allocation4], 1

</llo_original>
